<compile_context>
chip_gen: v7x
topology: tpu7x:2x2x1
jax: 0.10.0
libtpu: 0.0.40
codegen_flags: <defaults>
</compile_context>

<pallas_src>
import jax
import jax.numpy as jnp
import numpy as np
from jax.experimental import pallas as pl
from jax.experimental.pallas import tpu as pltpu


def lstm_lm_kernel(tokens_ref, emb_ref, w_ih_ref, w_hh_ref, b_ref,
                   w_out_ref, b_out_ref, out_ref, hs_ref):
    """Whole (short) sequence in one invocation.

    tokens_ref: (T, 1) int32 in VMEM    emb_ref:  (vocab, E) in VMEM
    w_ih_ref:   (E, 4H)                 w_hh_ref: (H, 4H)
    b_ref:      (1, 4H)  (= b_ih+b_hh)  w_out_ref:(H, Vp)    b_out_ref: (1, Vp)
    out_ref:    (T, Vp)                 hs_ref:   (T, H) VMEM scratch
    """
    T, _ = out_ref.shape
    H = w_hh_ref.shape[0]
    vocab = emb_ref.shape[0]

    # ---- Gate-column scale: halve the i/f/o quadrants so that a single tanh
    #      over the full gate vector yields tanh(x/2) there, and the sigmoid is
    #      recovered as 0.5*tanh(x/2) + 0.5 on the VPU (one EUP push saved per
    #      step).  One-time prologue VPU work, off the serial path.
    col = jax.lax.broadcasted_iota(jnp.int32, (1, 4 * H), 1)
    gscale = jnp.where((col >= 2 * H) & (col < 3 * H), 1.0, 0.5).astype(jnp.float32)

    # ---- One-hot embedding gather on the (idle) MXU.  Also clamps OOB tokens
    #      to an all-zero embedding row instead of reading arbitrary VMEM.
    tok = tokens_ref[...]                                              # (T, 1)
    onehot = (tok == jax.lax.broadcasted_iota(jnp.int32, (T, vocab), 1)
              ).astype(jnp.float32)                                    # (T, vocab)
    embeds = jnp.dot(onehot, emb_ref[...],
                     preferred_element_type=jnp.float32)               # (T, E)

    # ---- Batched input projection + combined bias, then gate scaling.
    gates_x = (jnp.dot(embeds, w_ih_ref[...],
                       preferred_element_type=jnp.float32)
               + b_ref[...]) * gscale                                  # (T, 4H)

    # Hoist the recurrent weight (scaled) once; the per-step matmul only
    # streams the (1,H) LHS.
    # TODO(synk): pltpu.matmul_push_rhs/acc_lhs would pin W_hh in the systolic
    # array across all 8 steps; kept on jnp.dot for portability.
    w_hh = w_hh_ref[...] * gscale                                      # (H, 4H)

    # ---- Fully unrolled recurrence: one (1,H)@(H,4H) matmul + 2 EUP pushes.
    h = jnp.zeros((1, H), jnp.float32)
    c = jnp.zeros((1, H), jnp.float32)
    for t in range(T):
        gates = gates_x[t:t + 1, :] + jnp.dot(
            h, w_hh, preferred_element_type=jnp.float32)               # (1, 4H)
        # PyTorch nn.LSTM gate order: i, f, g, o (i/f/o columns pre-halved).
        th = jnp.tanh(gates)             # single full-width EUP push
        sg = 0.5 * th + 0.5              # sigmoid(x) = 0.5*tanh(x/2)+0.5 (VPU)
        i = sg[:, 0 * H:1 * H]
        f = sg[:, 1 * H:2 * H]
        g = th[:, 2 * H:3 * H]
        o = sg[:, 3 * H:4 * H]
        c = f * c + i * g
        h = o * jnp.tanh(c)              # second (inherent) EUP push
        hs_ref[pl.ds(t, 1), :] = h       # direct row store, no concat

    # ---- Batched output projection + log_softmax(dim=1), lane-dense store.
    hs = hs_ref[...]                                                   # (T, H)
    logits = (jnp.dot(hs, w_out_ref[...],
                      preferred_element_type=jnp.float32)
              + b_out_ref[...])                                        # (T, Vp)
    m = jnp.max(logits, axis=-1, keepdims=True)
    shifted = logits - m
    lse = jnp.log(jnp.sum(jnp.exp(shifted), axis=-1, keepdims=True))
    out_ref[...] = shifted - lse


@jax.jit
def lstm_lm_forward(tokens, embedding, w_ih, w_hh, b, w_out, b_out):
    T = tokens.shape[0]
    H = w_hh.shape[0]
    V = w_out.shape[1]
    Vp = ((V + 127) // 128) * 128   # lane-dense output width

    # Pad the output projection to a lane-dense width; padded bias lanes get a
    # huge negative so they contribute nothing to the softmax normalizer.
    w_out_p = jnp.pad(w_out, ((0, 0), (0, Vp - V)))
    b_out_p = jnp.pad(b_out, ((0, 0), (0, Vp - V)), constant_values=-1e30)

    tok2 = tokens.reshape(T, 1).astype(jnp.int32)

    vmem = pl.BlockSpec(memory_space=pltpu.MemorySpace.VMEM)
    out = pl.pallas_call(
        lstm_lm_kernel,
        out_shape=jax.ShapeDtypeStruct((T, Vp), jnp.float32),
        in_specs=[vmem, vmem, vmem, vmem, vmem, vmem, vmem],
        out_specs=vmem,
        scratch_shapes=[pltpu.VMEM((T, H), jnp.float32)],
    )(tok2, embedding, w_ih, w_hh, b, w_out_p, b_out_p)
    return out[:, :V]


def reference_forward(tokens, embedding, w_ih, w_hh, b, w_out, b_out):
    """Pure-JAX reference mirroring PyTorch semantics, for verification."""
    embeds = embedding[tokens]
    H = w_hh.shape[0]
    h = jnp.zeros((1, H), jnp.float32)
    c = jnp.zeros((1, H), jnp.float32)
    outs = []
    for t in range(embeds.shape[0]):
        gates = embeds[t:t + 1] @ w_ih + h @ w_hh + b
        i = jax.nn.sigmoid(gates[:, 0 * H:1 * H])
        f = jax.nn.sigmoid(gates[:, 1 * H:2 * H])
        g = jnp.tanh(gates[:, 2 * H:3 * H])
        o = jax.nn.sigmoid(gates[:, 3 * H:4 * H])
        c = f * c + i * g
        h = o * jnp.tanh(c)
        logits = h @ w_out + b_out
        outs.append(jax.nn.log_softmax(logits, axis=1))
    return jnp.concatenate(outs, axis=0)


if __name__ == "__main__":
    # Small shapes consistent with the module.
    T = 8                 # sentence length
    vocab_size = 64
    embedding_dim = 32
    hidden_dim = 32
    output_dim = vocab_size

    key = jax.random.PRNGKey(0)
    k_emb, k_wih, k_whh, k_bih, k_bhh, k_wo, k_bo, k_tok = jax.random.split(key, 8)

    # nn.Embedding default init: N(0, 1)
    embedding = jax.random.normal(k_emb, (vocab_size, embedding_dim), jnp.float32)

    # nn.LSTM default init: U(-k, k), k = 1/sqrt(hidden_dim). Stored transposed.
    k_lstm = 1.0 / np.sqrt(hidden_dim)
    w_ih = jax.random.uniform(k_wih, (embedding_dim, 4 * hidden_dim),
                              jnp.float32, -k_lstm, k_lstm)
    w_hh = jax.random.uniform(k_whh, (hidden_dim, 4 * hidden_dim),
                              jnp.float32, -k_lstm, k_lstm)
    b_ih = jax.random.uniform(k_bih, (1, 4 * hidden_dim), jnp.float32, -k_lstm, k_lstm)
    b_hh = jax.random.uniform(k_bhh, (1, 4 * hidden_dim), jnp.float32, -k_lstm, k_lstm)
    b = b_ih + b_hh

    # nn.Linear default init: U(-k, k), k = 1/sqrt(hidden_dim). Stored transposed.
    k_lin = 1.0 / np.sqrt(hidden_dim)
    w_out = jax.random.uniform(k_wo, (hidden_dim, output_dim),
                               jnp.float32, -k_lin, k_lin)
    b_out = jax.random.uniform(k_bo, (1, output_dim), jnp.float32, -k_lin, k_lin)

    # Deterministic example "sentence" of token ids.
    tokens = jax.random.randint(k_tok, (T,), 0, vocab_size, jnp.int32)

    tag_scores = lstm_lm_forward(tokens, embedding, w_ih, w_hh, b, w_out, b_out)
    tag_scores = jax.block_until_ready(tag_scores)

    ref = reference_forward(tokens, embedding, w_ih, w_hh, b, w_out, b_out)
    np.testing.assert_allclose(np.asarray(tag_scores), np.asarray(ref),
                               rtol=2e-5, atol=2e-5)
    print("KERNEL_OK")
</pallas_src>

<mosaic_0001>
module attributes {stable_mosaic.version = 11 : i64} {
  func.func @lstm_lm_kernel(%arg0: memref<8x1xi32, #tpu.memory_space<vmem>>, %arg1: memref<64x32xf32, #tpu.memory_space<vmem>>, %arg2: memref<32x128xf32, #tpu.memory_space<vmem>>, %arg3: memref<32x128xf32, #tpu.memory_space<vmem>>, %arg4: memref<1x128xf32, #tpu.memory_space<vmem>>, %arg5: memref<32x128xf32, #tpu.memory_space<vmem>>, %arg6: memref<1x128xf32, #tpu.memory_space<vmem>>, %arg7: memref<8x128xf32, #tpu.memory_space<vmem>>, %arg8: memref<8x32xf32, #tpu.memory_space<vmem>>) attributes {dimension_semantics = [], scalar_prefetch = 0 : i64, scratch_operands = 1 : i64, tpu.core_type = #tpu.core_type<tc>} {
    %0 = tpu.iota {dimensions = array<i32: 1>} : vector<1x128xi32>
    %c64_i32 = arith.constant 64 : i32
    %1 = vector.broadcast %c64_i32 : i32 to vector<1x128xi32>
    %2 = arith.cmpi sge, %0, %1 : vector<1x128xi32>
    %c96_i32 = arith.constant 96 : i32
    %3 = vector.broadcast %c96_i32 : i32 to vector<1x128xi32>
    %4 = arith.cmpi slt, %0, %3 : vector<1x128xi32>
    %5 = arith.andi %2, %4 : vector<1x128xi1>
    %cst = arith.constant 1.000000e+00 : f32
    %cst_0 = arith.constant 5.000000e-01 : f32
    %6 = vector.broadcast %cst : f32 to vector<1x128xf32>
    %7 = vector.broadcast %cst_0 : f32 to vector<1x128xf32>
    %8 = arith.select %5, %6, %7 : vector<1x128xi1>, vector<1x128xf32>
    %c0 = arith.constant 0 : index
    %c0_1 = arith.constant 0 : index
    %9 = vector.load %arg0[%c0, %c0_1] : memref<8x1xi32, #tpu.memory_space<vmem>>, vector<8x1xi32>
    %10 = tpu.iota {dimensions = array<i32: 1>} : vector<8x64xi32>
    %11 = vector.broadcast %9 : vector<8x1xi32> to vector<8x64xi32>
    %12 = arith.cmpi eq, %11, %10 : vector<8x64xi32>
    %13 = arith.extui %12 : vector<8x64xi1> to vector<8x64xi32>
    %14 = arith.sitofp %13 : vector<8x64xi32> to vector<8x64xf32>
    %c0_2 = arith.constant 0 : index
    %c0_3 = arith.constant 0 : index
    %15 = vector.load %arg1[%c0_2, %c0_3] : memref<64x32xf32, #tpu.memory_space<vmem>>, vector<64x32xf32>
    %cst_4 = arith.constant dense<0.000000e+00> : vector<8x32xf32>
    %16 = tpu.matmul %14, %15, %cst_4 {dimension_numbers = #tpu.dot_dimension_numbers<[1], [0], [0], [1], [0, 0, 1, 1], [], []>} : vector<8x64xf32>, vector<64x32xf32>, vector<8x32xf32> -> vector<8x32xf32>
    %c0_5 = arith.constant 0 : index
    %c0_6 = arith.constant 0 : index
    %17 = vector.load %arg2[%c0_5, %c0_6] : memref<32x128xf32, #tpu.memory_space<vmem>>, vector<32x128xf32>
    %cst_7 = arith.constant dense<0.000000e+00> : vector<8x128xf32>
    %18 = tpu.matmul %16, %17, %cst_7 {dimension_numbers = #tpu.dot_dimension_numbers<[1], [0], [0], [1], [0, 0, 1, 1], [], []>} : vector<8x32xf32>, vector<32x128xf32>, vector<8x128xf32> -> vector<8x128xf32>
    %c0_8 = arith.constant 0 : index
    %c0_9 = arith.constant 0 : index
    %19 = vector.load %arg4[%c0_8, %c0_9] : memref<1x128xf32, #tpu.memory_space<vmem>>, vector<1x128xf32>
    %20 = vector.broadcast %19 : vector<1x128xf32> to vector<8x128xf32>
    %21 = arith.addf %18, %20 : vector<8x128xf32>
    %22 = vector.broadcast %8 : vector<1x128xf32> to vector<8x128xf32>
    %23 = arith.mulf %21, %22 : vector<8x128xf32>
    %c0_10 = arith.constant 0 : index
    %c0_11 = arith.constant 0 : index
    %24 = vector.load %arg3[%c0_10, %c0_11] : memref<32x128xf32, #tpu.memory_space<vmem>>, vector<32x128xf32>
    %25 = vector.broadcast %8 : vector<1x128xf32> to vector<32x128xf32>
    %26 = arith.mulf %24, %25 : vector<32x128xf32>
    %cst_12 = arith.constant 0.000000e+00 : f32
    %27 = vector.broadcast %cst_12 : f32 to vector<1x32xf32>
    %cst_13 = arith.constant 0.000000e+00 : f32
    %28 = vector.broadcast %cst_13 : f32 to vector<1x32xf32>
    %29 = vector.extract_strided_slice %23 {offsets = [0, 0], sizes = [1, 128], strides = [1, 1]} : vector<8x128xf32> to vector<1x128xf32>
    %cst_14 = arith.constant dense<0.000000e+00> : vector<1x128xf32>
    %30 = tpu.matmul %27, %26, %cst_14 {dimension_numbers = #tpu.dot_dimension_numbers<[1], [0], [0], [1], [0, 0, 1, 1], [], []>} : vector<1x32xf32>, vector<32x128xf32>, vector<1x128xf32> -> vector<1x128xf32>
    %31 = arith.addf %29, %30 : vector<1x128xf32>
    %32 = math.tanh %31 : vector<1x128xf32>
    %cst_15 = arith.constant 5.000000e-01 : f32
    %33 = vector.broadcast %cst_15 : f32 to vector<1x128xf32>
    %34 = arith.mulf %33, %32 : vector<1x128xf32>
    %cst_16 = arith.constant 5.000000e-01 : f32
    %35 = vector.broadcast %cst_16 : f32 to vector<1x128xf32>
    %36 = arith.addf %34, %35 : vector<1x128xf32>
    %37 = vector.extract_strided_slice %36 {offsets = [0, 0], sizes = [1, 32], strides = [1, 1]} : vector<1x128xf32> to vector<1x32xf32>
    %38 = vector.extract_strided_slice %36 {offsets = [0, 32], sizes = [1, 32], strides = [1, 1]} : vector<1x128xf32> to vector<1x32xf32>
    %39 = vector.extract_strided_slice %32 {offsets = [0, 64], sizes = [1, 32], strides = [1, 1]} : vector<1x128xf32> to vector<1x32xf32>
    %40 = vector.extract_strided_slice %36 {offsets = [0, 96], sizes = [1, 32], strides = [1, 1]} : vector<1x128xf32> to vector<1x32xf32>
    %41 = arith.mulf %38, %28 : vector<1x32xf32>
    %42 = arith.mulf %37, %39 : vector<1x32xf32>
    %43 = arith.addf %41, %42 : vector<1x32xf32>
    %44 = math.tanh %43 : vector<1x32xf32>
    %45 = arith.mulf %40, %44 : vector<1x32xf32>
    %c0_17 = arith.constant 0 : index
    %c0_18 = arith.constant 0 : index
    %46 = vector.load %arg8[%c0_17, %c0_18] : memref<8x32xf32, #tpu.memory_space<vmem>>, vector<1x32xf32>
    tpu.vector_store %arg8[%c0_17, %c0_18], %45 {strides = array<i32>} : memref<8x32xf32, #tpu.memory_space<vmem>>, vector<1x32xf32>,
    %47 = vector.extract_strided_slice %23 {offsets = [1, 0], sizes = [1, 128], strides = [1, 1]} : vector<8x128xf32> to vector<1x128xf32>
    %cst_19 = arith.constant dense<0.000000e+00> : vector<1x128xf32>
    %48 = tpu.matmul %45, %26, %cst_19 {dimension_numbers = #tpu.dot_dimension_numbers<[1], [0], [0], [1], [0, 0, 1, 1], [], []>} : vector<1x32xf32>, vector<32x128xf32>, vector<1x128xf32> -> vector<1x128xf32>
    %49 = arith.addf %47, %48 : vector<1x128xf32>
    %50 = math.tanh %49 : vector<1x128xf32>
    %cst_20 = arith.constant 5.000000e-01 : f32
    %51 = vector.broadcast %cst_20 : f32 to vector<1x128xf32>
    %52 = arith.mulf %51, %50 : vector<1x128xf32>
    %cst_21 = arith.constant 5.000000e-01 : f32
    %53 = vector.broadcast %cst_21 : f32 to vector<1x128xf32>
    %54 = arith.addf %52, %53 : vector<1x128xf32>
    %55 = vector.extract_strided_slice %54 {offsets = [0, 0], sizes = [1, 32], strides = [1, 1]} : vector<1x128xf32> to vector<1x32xf32>
    %56 = vector.extract_strided_slice %54 {offsets = [0, 32], sizes = [1, 32], strides = [1, 1]} : vector<1x128xf32> to vector<1x32xf32>
    %57 = vector.extract_strided_slice %50 {offsets = [0, 64], sizes = [1, 32], strides = [1, 1]} : vector<1x128xf32> to vector<1x32xf32>
    %58 = vector.extract_strided_slice %54 {offsets = [0, 96], sizes = [1, 32], strides = [1, 1]} : vector<1x128xf32> to vector<1x32xf32>
    %59 = arith.mulf %56, %43 : vector<1x32xf32>
    %60 = arith.mulf %55, %57 : vector<1x32xf32>
    %61 = arith.addf %59, %60 : vector<1x32xf32>
    %62 = math.tanh %61 : vector<1x32xf32>
    %63 = arith.mulf %58, %62 : vector<1x32xf32>
    %c1 = arith.constant 1 : index
    %c0_22 = arith.constant 0 : index
    %64 = vector.load %arg8[%c1, %c0_22] : memref<8x32xf32, #tpu.memory_space<vmem>>, vector<1x32xf32>
    tpu.vector_store %arg8[%c1, %c0_22], %63 {strides = array<i32>} : memref<8x32xf32, #tpu.memory_space<vmem>>, vector<1x32xf32>,
    %65 = vector.extract_strided_slice %23 {offsets = [2, 0], sizes = [1, 128], strides = [1, 1]} : vector<8x128xf32> to vector<1x128xf32>
    %cst_23 = arith.constant dense<0.000000e+00> : vector<1x128xf32>
    %66 = tpu.matmul %63, %26, %cst_23 {dimension_numbers = #tpu.dot_dimension_numbers<[1], [0], [0], [1], [0, 0, 1, 1], [], []>} : vector<1x32xf32>, vector<32x128xf32>, vector<1x128xf32> -> vector<1x128xf32>
    %67 = arith.addf %65, %66 : vector<1x128xf32>
    %68 = math.tanh %67 : vector<1x128xf32>
    %cst_24 = arith.constant 5.000000e-01 : f32
    %69 = vector.broadcast %cst_24 : f32 to vector<1x128xf32>
    %70 = arith.mulf %69, %68 : vector<1x128xf32>
    %cst_25 = arith.constant 5.000000e-01 : f32
    %71 = vector.broadcast %cst_25 : f32 to vector<1x128xf32>
    %72 = arith.addf %70, %71 : vector<1x128xf32>
    %73 = vector.extract_strided_slice %72 {offsets = [0, 0], sizes = [1, 32], strides = [1, 1]} : vector<1x128xf32> to vector<1x32xf32>
    %74 = vector.extract_strided_slice %72 {offsets = [0, 32], sizes = [1, 32], strides = [1, 1]} : vector<1x128xf32> to vector<1x32xf32>
    %75 = vector.extract_strided_slice %68 {offsets = [0, 64], sizes = [1, 32], strides = [1, 1]} : vector<1x128xf32> to vector<1x32xf32>
    %76 = vector.extract_strided_slice %72 {offsets = [0, 96], sizes = [1, 32], strides = [1, 1]} : vector<1x128xf32> to vector<1x32xf32>
    %77 = arith.mulf %74, %61 : vector<1x32xf32>
    %78 = arith.mulf %73, %75 : vector<1x32xf32>
    %79 = arith.addf %77, %78 : vector<1x32xf32>
    %80 = math.tanh %79 : vector<1x32xf32>
    %81 = arith.mulf %76, %80 : vector<1x32xf32>
    %c2 = arith.constant 2 : index
    %c0_26 = arith.constant 0 : index
    %82 = vector.load %arg8[%c2, %c0_26] : memref<8x32xf32, #tpu.memory_space<vmem>>, vector<1x32xf32>
    tpu.vector_store %arg8[%c2, %c0_26], %81 {strides = array<i32>} : memref<8x32xf32, #tpu.memory_space<vmem>>, vector<1x32xf32>,
    %83 = vector.extract_strided_slice %23 {offsets = [3, 0], sizes = [1, 128], strides = [1, 1]} : vector<8x128xf32> to vector<1x128xf32>
    %cst_27 = arith.constant dense<0.000000e+00> : vector<1x128xf32>
    %84 = tpu.matmul %81, %26, %cst_27 {dimension_numbers = #tpu.dot_dimension_numbers<[1], [0], [0], [1], [0, 0, 1, 1], [], []>} : vector<1x32xf32>, vector<32x128xf32>, vector<1x128xf32> -> vector<1x128xf32>
    %85 = arith.addf %83, %84 : vector<1x128xf32>
    %86 = math.tanh %85 : vector<1x128xf32>
    %cst_28 = arith.constant 5.000000e-01 : f32
    %87 = vector.broadcast %cst_28 : f32 to vector<1x128xf32>
    %88 = arith.mulf %87, %86 : vector<1x128xf32>
    %cst_29 = arith.constant 5.000000e-01 : f32
    %89 = vector.broadcast %cst_29 : f32 to vector<1x128xf32>
    %90 = arith.addf %88, %89 : vector<1x128xf32>
    %91 = vector.extract_strided_slice %90 {offsets = [0, 0], sizes = [1, 32], strides = [1, 1]} : vector<1x128xf32> to vector<1x32xf32>
    %92 = vector.extract_strided_slice %90 {offsets = [0, 32], sizes = [1, 32], strides = [1, 1]} : vector<1x128xf32> to vector<1x32xf32>
    %93 = vector.extract_strided_slice %86 {offsets = [0, 64], sizes = [1, 32], strides = [1, 1]} : vector<1x128xf32> to vector<1x32xf32>
    %94 = vector.extract_strided_slice %90 {offsets = [0, 96], sizes = [1, 32], strides = [1, 1]} : vector<1x128xf32> to vector<1x32xf32>
    %95 = arith.mulf %92, %79 : vector<1x32xf32>
    %96 = arith.mulf %91, %93 : vector<1x32xf32>
    %97 = arith.addf %95, %96 : vector<1x32xf32>
    %98 = math.tanh %97 : vector<1x32xf32>
    %99 = arith.mulf %94, %98 : vector<1x32xf32>
    %c3 = arith.constant 3 : index
    %c0_30 = arith.constant 0 : index
    %100 = vector.load %arg8[%c3, %c0_30] : memref<8x32xf32, #tpu.memory_space<vmem>>, vector<1x32xf32>
    tpu.vector_store %arg8[%c3, %c0_30], %99 {strides = array<i32>} : memref<8x32xf32, #tpu.memory_space<vmem>>, vector<1x32xf32>,
    %101 = vector.extract_strided_slice %23 {offsets = [4, 0], sizes = [1, 128], strides = [1, 1]} : vector<8x128xf32> to vector<1x128xf32>
    %cst_31 = arith.constant dense<0.000000e+00> : vector<1x128xf32>
    %102 = tpu.matmul %99, %26, %cst_31 {dimension_numbers = #tpu.dot_dimension_numbers<[1], [0], [0], [1], [0, 0, 1, 1], [], []>} : vector<1x32xf32>, vector<32x128xf32>, vector<1x128xf32> -> vector<1x128xf32>
    %103 = arith.addf %101, %102 : vector<1x128xf32>
    %104 = math.tanh %103 : vector<1x128xf32>
    %cst_32 = arith.constant 5.000000e-01 : f32
    %105 = vector.broadcast %cst_32 : f32 to vector<1x128xf32>
    %106 = arith.mulf %105, %104 : vector<1x128xf32>
    %cst_33 = arith.constant 5.000000e-01 : f32
    %107 = vector.broadcast %cst_33 : f32 to vector<1x128xf32>
    %108 = arith.addf %106, %107 : vector<1x128xf32>
    %109 = vector.extract_strided_slice %108 {offsets = [0, 0], sizes = [1, 32], strides = [1, 1]} : vector<1x128xf32> to vector<1x32xf32>
    %110 = vector.extract_strided_slice %108 {offsets = [0, 32], sizes = [1, 32], strides = [1, 1]} : vector<1x128xf32> to vector<1x32xf32>
    %111 = vector.extract_strided_slice %104 {offsets = [0, 64], sizes = [1, 32], strides = [1, 1]} : vector<1x128xf32> to vector<1x32xf32>
    %112 = vector.extract_strided_slice %108 {offsets = [0, 96], sizes = [1, 32], strides = [1, 1]} : vector<1x128xf32> to vector<1x32xf32>
    %113 = arith.mulf %110, %97 : vector<1x32xf32>
    %114 = arith.mulf %109, %111 : vector<1x32xf32>
    %115 = arith.addf %113, %114 : vector<1x32xf32>
    %116 = math.tanh %115 : vector<1x32xf32>
    %117 = arith.mulf %112, %116 : vector<1x32xf32>
    %c4 = arith.constant 4 : index
    %c0_34 = arith.constant 0 : index
    %118 = vector.load %arg8[%c4, %c0_34] : memref<8x32xf32, #tpu.memory_space<vmem>>, vector<1x32xf32>
    tpu.vector_store %arg8[%c4, %c0_34], %117 {strides = array<i32>} : memref<8x32xf32, #tpu.memory_space<vmem>>, vector<1x32xf32>,
    %119 = vector.extract_strided_slice %23 {offsets = [5, 0], sizes = [1, 128], strides = [1, 1]} : vector<8x128xf32> to vector<1x128xf32>
    %cst_35 = arith.constant dense<0.000000e+00> : vector<1x128xf32>
    %120 = tpu.matmul %117, %26, %cst_35 {dimension_numbers = #tpu.dot_dimension_numbers<[1], [0], [0], [1], [0, 0, 1, 1], [], []>} : vector<1x32xf32>, vector<32x128xf32>, vector<1x128xf32> -> vector<1x128xf32>
    %121 = arith.addf %119, %120 : vector<1x128xf32>
    %122 = math.tanh %121 : vector<1x128xf32>
    %cst_36 = arith.constant 5.000000e-01 : f32
    %123 = vector.broadcast %cst_36 : f32 to vector<1x128xf32>
    %124 = arith.mulf %123, %122 : vector<1x128xf32>
    %cst_37 = arith.constant 5.000000e-01 : f32
    %125 = vector.broadcast %cst_37 : f32 to vector<1x128xf32>
    %126 = arith.addf %124, %125 : vector<1x128xf32>
    %127 = vector.extract_strided_slice %126 {offsets = [0, 0], sizes = [1, 32], strides = [1, 1]} : vector<1x128xf32> to vector<1x32xf32>
    %128 = vector.extract_strided_slice %126 {offsets = [0, 32], sizes = [1, 32], strides = [1, 1]} : vector<1x128xf32> to vector<1x32xf32>
    %129 = vector.extract_strided_slice %122 {offsets = [0, 64], sizes = [1, 32], strides = [1, 1]} : vector<1x128xf32> to vector<1x32xf32>
    %130 = vector.extract_strided_slice %126 {offsets = [0, 96], sizes = [1, 32], strides = [1, 1]} : vector<1x128xf32> to vector<1x32xf32>
    %131 = arith.mulf %128, %115 : vector<1x32xf32>
    %132 = arith.mulf %127, %129 : vector<1x32xf32>
    %133 = arith.addf %131, %132 : vector<1x32xf32>
    %134 = math.tanh %133 : vector<1x32xf32>
    %135 = arith.mulf %130, %134 : vector<1x32xf32>
    %c5 = arith.constant 5 : index
    %c0_38 = arith.constant 0 : index
    %136 = vector.load %arg8[%c5, %c0_38] : memref<8x32xf32, #tpu.memory_space<vmem>>, vector<1x32xf32>
    tpu.vector_store %arg8[%c5, %c0_38], %135 {strides = array<i32>} : memref<8x32xf32, #tpu.memory_space<vmem>>, vector<1x32xf32>,
    %137 = vector.extract_strided_slice %23 {offsets = [6, 0], sizes = [1, 128], strides = [1, 1]} : vector<8x128xf32> to vector<1x128xf32>
    %cst_39 = arith.constant dense<0.000000e+00> : vector<1x128xf32>
    %138 = tpu.matmul %135, %26, %cst_39 {dimension_numbers = #tpu.dot_dimension_numbers<[1], [0], [0], [1], [0, 0, 1, 1], [], []>} : vector<1x32xf32>, vector<32x128xf32>, vector<1x128xf32> -> vector<1x128xf32>
    %139 = arith.addf %137, %138 : vector<1x128xf32>
    %140 = math.tanh %139 : vector<1x128xf32>
    %cst_40 = arith.constant 5.000000e-01 : f32
    %141 = vector.broadcast %cst_40 : f32 to vector<1x128xf32>
    %142 = arith.mulf %141, %140 : vector<1x128xf32>
    %cst_41 = arith.constant 5.000000e-01 : f32
    %143 = vector.broadcast %cst_41 : f32 to vector<1x128xf32>
    %144 = arith.addf %142, %143 : vector<1x128xf32>
    %145 = vector.extract_strided_slice %144 {offsets = [0, 0], sizes = [1, 32], strides = [1, 1]} : vector<1x128xf32> to vector<1x32xf32>
    %146 = vector.extract_strided_slice %144 {offsets = [0, 32], sizes = [1, 32], strides = [1, 1]} : vector<1x128xf32> to vector<1x32xf32>
    %147 = vector.extract_strided_slice %140 {offsets = [0, 64], sizes = [1, 32], strides = [1, 1]} : vector<1x128xf32> to vector<1x32xf32>
    %148 = vector.extract_strided_slice %144 {offsets = [0, 96], sizes = [1, 32], strides = [1, 1]} : vector<1x128xf32> to vector<1x32xf32>
    %149 = arith.mulf %146, %133 : vector<1x32xf32>
    %150 = arith.mulf %145, %147 : vector<1x32xf32>
    %151 = arith.addf %149, %150 : vector<1x32xf32>
    %152 = math.tanh %151 : vector<1x32xf32>
    %153 = arith.mulf %148, %152 : vector<1x32xf32>
    %c6 = arith.constant 6 : index
    %c0_42 = arith.constant 0 : index
    %154 = vector.load %arg8[%c6, %c0_42] : memref<8x32xf32, #tpu.memory_space<vmem>>, vector<1x32xf32>
    tpu.vector_store %arg8[%c6, %c0_42], %153 {strides = array<i32>} : memref<8x32xf32, #tpu.memory_space<vmem>>, vector<1x32xf32>,
    %155 = vector.extract_strided_slice %23 {offsets = [7, 0], sizes = [1, 128], strides = [1, 1]} : vector<8x128xf32> to vector<1x128xf32>
    %cst_43 = arith.constant dense<0.000000e+00> : vector<1x128xf32>
    %156 = tpu.matmul %153, %26, %cst_43 {dimension_numbers = #tpu.dot_dimension_numbers<[1], [0], [0], [1], [0, 0, 1, 1], [], []>} : vector<1x32xf32>, vector<32x128xf32>, vector<1x128xf32> -> vector<1x128xf32>
    %157 = arith.addf %155, %156 : vector<1x128xf32>
    %158 = math.tanh %157 : vector<1x128xf32>
    %cst_44 = arith.constant 5.000000e-01 : f32
    %159 = vector.broadcast %cst_44 : f32 to vector<1x128xf32>
    %160 = arith.mulf %159, %158 : vector<1x128xf32>
    %cst_45 = arith.constant 5.000000e-01 : f32
    %161 = vector.broadcast %cst_45 : f32 to vector<1x128xf32>
    %162 = arith.addf %160, %161 : vector<1x128xf32>
    %163 = vector.extract_strided_slice %162 {offsets = [0, 0], sizes = [1, 32], strides = [1, 1]} : vector<1x128xf32> to vector<1x32xf32>
    %164 = vector.extract_strided_slice %162 {offsets = [0, 32], sizes = [1, 32], strides = [1, 1]} : vector<1x128xf32> to vector<1x32xf32>
    %165 = vector.extract_strided_slice %158 {offsets = [0, 64], sizes = [1, 32], strides = [1, 1]} : vector<1x128xf32> to vector<1x32xf32>
    %166 = vector.extract_strided_slice %162 {offsets = [0, 96], sizes = [1, 32], strides = [1, 1]} : vector<1x128xf32> to vector<1x32xf32>
    %167 = arith.mulf %164, %151 : vector<1x32xf32>
    %168 = arith.mulf %163, %165 : vector<1x32xf32>
    %169 = arith.addf %167, %168 : vector<1x32xf32>
    %170 = math.tanh %169 : vector<1x32xf32>
    %171 = arith.mulf %166, %170 : vector<1x32xf32>
    %c7 = arith.constant 7 : index
    %c0_46 = arith.constant 0 : index
    %172 = vector.load %arg8[%c7, %c0_46] : memref<8x32xf32, #tpu.memory_space<vmem>>, vector<1x32xf32>
    tpu.vector_store %arg8[%c7, %c0_46], %171 {strides = array<i32>} : memref<8x32xf32, #tpu.memory_space<vmem>>, vector<1x32xf32>,
    %c0_47 = arith.constant 0 : index
    %c0_48 = arith.constant 0 : index
    %173 = vector.load %arg8[%c0_47, %c0_48] : memref<8x32xf32, #tpu.memory_space<vmem>>, vector<8x32xf32>
    %c0_49 = arith.constant 0 : index
    %c0_50 = arith.constant 0 : index
    %174 = vector.load %arg5[%c0_49, %c0_50] : memref<32x128xf32, #tpu.memory_space<vmem>>, vector<32x128xf32>
    %cst_51 = arith.constant dense<0.000000e+00> : vector<8x128xf32>
    %175 = tpu.matmul %173, %174, %cst_51 {dimension_numbers = #tpu.dot_dimension_numbers<[1], [0], [0], [1], [0, 0, 1, 1], [], []>} : vector<8x32xf32>, vector<32x128xf32>, vector<8x128xf32> -> vector<8x128xf32>
    %c0_52 = arith.constant 0 : index
    %c0_53 = arith.constant 0 : index
    %176 = vector.load %arg6[%c0_52, %c0_53] : memref<1x128xf32, #tpu.memory_space<vmem>>, vector<1x128xf32>
    %177 = vector.broadcast %176 : vector<1x128xf32> to vector<8x128xf32>
    %178 = arith.addf %175, %177 : vector<8x128xf32>
    %cst_54 = arith.constant dense<0xFF800000> : vector<8xf32>
    %179 = vector.multi_reduction <maximumf>, %178, %cst_54 [1] : vector<8x128xf32> to vector<8xf32>
    %180 = vector.shape_cast %179 : vector<8xf32> to vector<8x1xf32>
    %181 = vector.broadcast %180 : vector<8x1xf32> to vector<8x128xf32>
    %182 = arith.subf %178, %181 : vector<8x128xf32>
    %183 = math.exp %182 : vector<8x128xf32>
    %cst_55 = arith.constant dense<0.000000e+00> : vector<8xf32>
    %184 = vector.multi_reduction <add>, %183, %cst_55 [1] : vector<8x128xf32> to vector<8xf32>
    %185 = vector.shape_cast %184 : vector<8xf32> to vector<8x1xf32>
    %186 = math.log %185 : vector<8x1xf32>
    %187 = vector.broadcast %186 : vector<8x1xf32> to vector<8x128xf32>
    %188 = arith.subf %182, %187 : vector<8x128xf32>
    %c0_56 = arith.constant 0 : index
    %c0_57 = arith.constant 0 : index
    %189 = vector.load %arg7[%c0_56, %c0_57] : memref<8x128xf32, #tpu.memory_space<vmem>>, vector<8x128xf32>
    tpu.vector_store %arg7[%c0_56, %c0_57], %188 {strides = array<i32>} : memref<8x128xf32, #tpu.memory_space<vmem>>, vector<8x128xf32>,
    return
  }
}

</mosaic_0001>

<llo_original>
// kernel: lstm_lm_forward.1
$region0: #{lstm_lm_forward.1}
  #allocation0 [shape = 'u32[]', space=smem, size = 0x4, offset = 0x4, fixed_abs, tag = 'smem constant byte address 0x4 - core index']
  #allocation1 [shape = 'u32[144,128]{1,0:T(1,128)}', space=vmem, size = 0x12000, scoped, tag = 'internal scratch']
  #allocation2 [shape = 'f32[8,32]{1,0:T(8,128)}', space=vmem, size = 0x1000, scoped, tag = 'scratch operand']
  %s0 = inlined_call_operand.vmem [shape: s32[8,1], index: 0, kind: input, shape index: {}]
  %s1 = inlined_call_operand.vmem [shape: f32[64,32], index: 1, kind: input, shape index: {}]
  %s2 = inlined_call_operand.vmem [shape: f32[32,128], index: 2, kind: input, shape index: {}]
  %s3 = inlined_call_operand.vmem [shape: f32[32,128], index: 3, kind: input, shape index: {}]
  %s4 = inlined_call_operand.vmem [shape: f32[1,128], index: 4, kind: input, shape index: {}]
  %s5 = inlined_call_operand.vmem [shape: f32[32,128], index: 5, kind: input, shape index: {}]
  %s6 = inlined_call_operand.vmem [shape: f32[1,128], index: 6, kind: input, shape index: {}]
  %s7 = inlined_call_operand.hbm [shape: f32[8,128], index: 7, kind: output, shape index: {}]
  %s8 = sld [smem:[#allocation0]]
  $region38: #{lstm_lm_forward.1} parent=0
    _
  %s10 = ssub.s32 1, %s8
  %s11 = scalar_select 0, %s10, %s8
  $region1: #{lstm_lm_forward.1} parent=0
    #allocation3 [shape = 'u8[4096]{0}', space=vmem, size = 0x1000, scoped, tag = 'output window, operand 0, single buffered']
    #allocation4 [shape = 's32[1]{0}', space=sflag, size = 0x4, scoped, tag = 'scoped memory for lstm_lm_forward.1']
    %12 = vsyncpa [#allocation4], 0
    // Predicated region
    $region2: #{lstm_lm_forward.1} parent=1 // pred_check
      _
    $region3: #{lstm_lm_forward.1} parent=1 // pred_check_branch
      %14 = sbr.rel (0) target = $region5
    $region4: #{lstm_lm_forward.1} parent=1 // pred_region
      _
    $region5: #{lstm_lm_forward.1} parent=1 // pred_fallthru
      _
    // Predicated region
    $region6: #{lstm_lm_forward.1} parent=1 // pred_check
      _
    $region7: #{lstm_lm_forward.1} parent=1 // pred_check_branch
      %16 = sbr.rel (0) target = $region9
    $region8: #{lstm_lm_forward.1} parent=1 // pred_region
      _
    $region9: #{lstm_lm_forward.1} parent=1 // pred_fallthru
      _
    // Predicated region
    $region10: #{lstm_lm_forward.1} parent=1 // pred_check
      _
    $region11: #{lstm_lm_forward.1} parent=1 // pred_check_branch
      %18 = sbr.rel (0) target = $region13
    $region12: #{lstm_lm_forward.1} parent=1 // pred_region
      _
    $region13: #{lstm_lm_forward.1} parent=1 // pred_fallthru
      _
    // Predicated region
    $region14: #{lstm_lm_forward.1} parent=1 // pred_check
      _
    $region15: #{lstm_lm_forward.1} parent=1 // pred_check_branch
      %20 = sbr.rel (0) target = $region17
    $region16: #{lstm_lm_forward.1} parent=1 // pred_region
      _
    $region17: #{lstm_lm_forward.1} parent=1 // pred_fallthru
      _
    // Predicated region
    $region18: #{lstm_lm_forward.1} parent=1 // pred_check
      _
    $region19: #{lstm_lm_forward.1} parent=1 // pred_check_branch
      %22 = sbr.rel (0) target = $region21
    $region20: #{lstm_lm_forward.1} parent=1 // pred_region
      _
    $region21: #{lstm_lm_forward.1} parent=1 // pred_fallthru
      _
    // Predicated region
    $region22: #{lstm_lm_forward.1} parent=1 // pred_check
      _
    $region23: #{lstm_lm_forward.1} parent=1 // pred_check_branch
      %24 = sbr.rel (0) target = $region25
    $region24: #{lstm_lm_forward.1} parent=1 // pred_region
      _
    $region25: #{lstm_lm_forward.1} parent=1 // pred_fallthru
      _
    // Predicated region
    $region26: #{lstm_lm_forward.1} parent=1 // pred_check
      _
    $region27: #{lstm_lm_forward.1} parent=1 // pred_check_branch
      %26 = sbr.rel (0) target = $region29
    $region28: #{lstm_lm_forward.1} parent=1 // pred_region
      _
    $region29: #{lstm_lm_forward.1} parent=1 // pred_fallthru
      _
    %v27 = vlaneseq
    %v28 = vand.u32 %v27, 127
    %vm29 = vcmp.ge.s32.totalorder %v28, 64
    %vm30 = vcmp.lt.s32.totalorder %v28, 96
    %vm31 = vmand %vm29, %vm30
    %v32 = vsel %vm31, 1.0, 0.5
    %v33 = vld [vmem:[%s0] sm:$0xff]
    %34 = vset.pattern.permute.xlu0 0
    %35 = vperm.xlu0 %34, %v33
    %v36 = vpop.permute.xlu0 %35
    %vm37 = vcmp.eq.s32.totalorder %v36, %v28
    %v38 = vsel %vm37, 1, 0
    %v39 = vcvt.s32.f32 %v38
    %v40 = vld [vmem:[%s1] sm:$0xff]
    %v41 = vld [vmem:[%s1 + $0x8] sm:$0xff]
    %v42 = vld [vmem:[%s1 + $0x10] sm:$0xff]
    %v43 = vld [vmem:[%s1 + $0x18] sm:$0xff]
    %v44 = vld [vmem:[%s1 + $0x20] sm:$0xff]
    %v45 = vld [vmem:[%s1 + $0x28] sm:$0xff]
    %v46 = vld [vmem:[%s1 + $0x30] sm:$0xff]
    %v47 = vld [vmem:[%s1 + $0x38] sm:$0xff]
    %vm48 = vcmask 523264
    %v50 = vsel %vm48, %v39, 0
    %52 = vmatprep.subr.mxu0 0.0
    %53 = vmatpush1.msra.mxu0 %v40
    %54 = vmatprep.subr.mxu0 0.0
    %55 = vmatpush1.msra.mxu0 %v41
    %56 = vmatprep.subr.mxu0 0.0
    %57 = vmatpush1.msra.mxu0 %v42
    %58 = vmatprep.subr.mxu0 0.0
    %59 = vmatpush1.msra.mxu0 %v43
    %60 = vmatprep.subr.mxu0 0.0
    %61 = vmatpush1.msra.mxu0 %v44
    %62 = vmatprep.subr.mxu0 0.0
    %63 = vmatpush1.msra.mxu0 %v45
    %64 = vmatprep.subr.mxu0 0.0
    %65 = vmatpush1.msra.mxu0 %v46
    %66 = vmatprep.subr.mxu0 0.0
    %67 = vmatpush1.msra.mxu0 %v47
    %68 = vmatprep.subr.mxu0 0.0
    %69 = vmatpush1.msra.mxu0 0.0
    %70 = vmatprep.subr.mxu0 0.0
    %71 = vmatpush1.msra.mxu0 0.0
    %72 = vmatprep.subr.mxu0 0.0
    %73 = vmatpush1.msra.mxu0 0.0
    %74 = vmatprep.subr.mxu0 0.0
    %75 = vmatpush1.msra.mxu0 0.0
    %76 = vmatprep.subr.mxu0 0.0
    %77 = vmatpush1.msra.mxu0 0.0
    %78 = vmatprep.subr.mxu0 0.0
    %79 = vmatpush1.msra.mxu0 0.0
    %80 = vmatprep.subr.mxu0 0.0
    %81 = vmatpush1.msra.mxu0 0.0
    %82 = vmatprep.subr.mxu0 0.0
    %83 = vmatpush1.msra.mxu0 0.0
    %84 = vmatprep.subr.mxu0 0.0
    %85 = vmatpush1.msra.mxu0 0.0
    %86 = vmatprep.subr.mxu0 0.0
    %87 = vmatpush1.msra.mxu0 0.0
    %88 = vmatprep.subr.mxu0 0.0
    %89 = vmatpush1.msra.mxu0 0.0
    %90 = vmatprep.subr.mxu0 0.0
    %91 = vmatpush1.msra.mxu0 0.0
    %92 = vmatprep.subr.mxu0 0.0
    %93 = vmatpush1.msra.mxu0 0.0
    %94 = vmatprep.subr.mxu0 0.0
    %95 = vmatpush1.msra.mxu0 0.0
    %96 = vmatprep.subr.mxu0 0.0
    %97 = vmatpush1.msra.mxu0 0.0
    %98 = vmatprep.subr.mxu0 0.0
    %99 = vmatpush1.msra.mxu0 0.0
    %100 = vmatprep.subr.mxu0 0.0
    %101 = vmatpush1.msra.mxu0 0.0
    %102 = vmatprep.subr.mxu0 0.0
    %103 = vmatpush1.msra.mxu0 0.0
    %104 = vmatprep.subr.mxu0 0.0
    %105 = vmatpush1.msra.mxu0 0.0
    %106 = vmatprep.subr.mxu0 0.0
    %107 = vmatpush1.msra.mxu0 0.0
    %108 = vmatprep.subr.mxu0 0.0
    %109 = vmatpush1.msra.mxu0 0.0
    %110 = vmatprep.subr.mxu0 0.0
    %111 = vmatpush1.msra.mxu0 0.0
    %112 = vmatprep.subr.mxu0 0.0
    %113 = vmatpush1.msra.mxu0 0.0
    %114 = vmatprep.subr.mxu0 0.0
    %115 = vmatpush1.msra.mxu0 0.0
    %116 = vmatprep.mubr.f32.mxu0 0.0
    %117 = vmatmul.mubr.f32.gmra.mrb[0].mxu0 %v50
    %v118 = vpop.f32.mrb[0].mxu0
    %v119 = vadd.f32 0.0, %v118
    %v120 = vpop.f32.mrb[0].mxu0
    %121 = vdwg.mxu0
    %v122 = vld [vmem:[%s2] sm:$0xff]
    %v123 = vld [vmem:[%s2 + $0x8] sm:$0xff]
    %v124 = vld [vmem:[%s2 + $0x10] sm:$0xff]
    %v125 = vld [vmem:[%s2 + $0x18] sm:$0xff]
    %v126 = vld [vmem:[%s4] sm:$0x1]
    %v128 = vlaneseq
    %v129 = vshrl.u32 %v128, 7
    %v130 = vsub.s32 0, %v129
    %v131 = vrot.slane %v126, %v130
    %vm133 = vcmask 261120
    %v135 = vsel %vm133, %v119, 0
    %137 = vmatprep.subr.mxu0 0.0
    %138 = vmatpush1.msra.mxu0 %v122
    %139 = vmatprep.subr.mxu0 0.0
    %140 = vmatpush1.msra.mxu0 %v123
    %141 = vmatprep.subr.mxu0 0.0
    %142 = vmatpush1.msra.mxu0 %v124
    %143 = vmatprep.subr.mxu0 0.0
    %144 = vmatpush1.msra.mxu0 %v125
    %145 = vmatprep.subr.mxu0 0.0
    %146 = vmatpush1.msra.mxu0 0.0
    %147 = vmatprep.subr.mxu0 0.0
    %148 = vmatpush1.msra.mxu0 0.0
    %149 = vmatprep.subr.mxu0 0.0
    %150 = vmatpush1.msra.mxu0 0.0
    %151 = vmatprep.subr.mxu0 0.0
    %152 = vmatpush1.msra.mxu0 0.0
    %153 = vmatprep.subr.mxu0 0.0
    %154 = vmatpush1.msra.mxu0 0.0
    %155 = vmatprep.subr.mxu0 0.0
    %156 = vmatpush1.msra.mxu0 0.0
    %157 = vmatprep.subr.mxu0 0.0
    %158 = vmatpush1.msra.mxu0 0.0
    %159 = vmatprep.subr.mxu0 0.0
    %160 = vmatpush1.msra.mxu0 0.0
    %161 = vmatprep.subr.mxu0 0.0
    %162 = vmatpush1.msra.mxu0 0.0
    %163 = vmatprep.subr.mxu0 0.0
    %164 = vmatpush1.msra.mxu0 0.0
    %165 = vmatprep.subr.mxu0 0.0
    %166 = vmatpush1.msra.mxu0 0.0
    %167 = vmatprep.subr.mxu0 0.0
    %168 = vmatpush1.msra.mxu0 0.0
    %169 = vmatprep.subr.mxu0 0.0
    %170 = vmatpush1.msra.mxu0 0.0
    %171 = vmatprep.subr.mxu0 0.0
    %172 = vmatpush1.msra.mxu0 0.0
    %173 = vmatprep.subr.mxu0 0.0
    %174 = vmatpush1.msra.mxu0 0.0
    %175 = vmatprep.subr.mxu0 0.0
    %176 = vmatpush1.msra.mxu0 0.0
    %177 = vmatprep.subr.mxu0 0.0
    %178 = vmatpush1.msra.mxu0 0.0
    %179 = vmatprep.subr.mxu0 0.0
    %180 = vmatpush1.msra.mxu0 0.0
    %181 = vmatprep.subr.mxu0 0.0
    %182 = vmatpush1.msra.mxu0 0.0
    %183 = vmatprep.subr.mxu0 0.0
    %184 = vmatpush1.msra.mxu0 0.0
    %185 = vmatprep.subr.mxu0 0.0
    %186 = vmatpush1.msra.mxu0 0.0
    %187 = vmatprep.subr.mxu0 0.0
    %188 = vmatpush1.msra.mxu0 0.0
    %189 = vmatprep.subr.mxu0 0.0
    %190 = vmatpush1.msra.mxu0 0.0
    %191 = vmatprep.subr.mxu0 0.0
    %192 = vmatpush1.msra.mxu0 0.0
    %193 = vmatprep.subr.mxu0 0.0
    %194 = vmatpush1.msra.mxu0 0.0
    %195 = vmatprep.subr.mxu0 0.0
    %196 = vmatpush1.msra.mxu0 0.0
    %197 = vmatprep.subr.mxu0 0.0
    %198 = vmatpush1.msra.mxu0 0.0
    %199 = vmatprep.subr.mxu0 0.0
    %200 = vmatpush1.msra.mxu0 0.0
    %201 = vmatprep.mubr.f32.mxu0 0.0
    %202 = vmatmul.mubr.f32.gmra.mrb[0].mxu0 %v135
    %v203 = vpop.f32.mrb[0].mxu0
    %v204 = vadd.f32 %v131, %v203
    %v205 = vpop.f32.mrb[0].mxu0
    %206 = vdwg.mxu0
    %v207 = vmul.f32 %v204, %v32
    %v208 = vld [vmem:[%s3] sm:$0xff]
    %v209 = vld [vmem:[%s3 + $0x8] sm:$0xff]
    %v210 = vld [vmem:[%s3 + $0x10] sm:$0xff]
    %v211 = vld [vmem:[%s3 + $0x18] sm:$0xff]
    %v212 = vmul.f32 %v208, %v32
    %v213 = vmul.f32 %v209, %v32
    %v214 = vmul.f32 %v210, %v32
    %v215 = vmul.f32 %v211, %v32
    %v217 = vsel %vm133, 0.0, 0
    %219 = vmatprep.subr.mxu0 0.0
    %220 = vmatpush1.msra.mxu0 %v212
    %221 = vmatprep.subr.mxu0 0.0
    %222 = vmatpush1.msra.mxu0 %v213
    %223 = vmatprep.subr.mxu0 0.0
    %224 = vmatpush1.msra.mxu0 %v214
    %225 = vmatprep.subr.mxu0 0.0
    %226 = vmatpush1.msra.mxu0 %v215
    %227 = vmatprep.subr.mxu0 0.0
    %228 = vmatpush1.msra.mxu0 0.0
    %229 = vmatprep.subr.mxu0 0.0
    %230 = vmatpush1.msra.mxu0 0.0
    %231 = vmatprep.subr.mxu0 0.0
    %232 = vmatpush1.msra.mxu0 0.0
    %233 = vmatprep.subr.mxu0 0.0
    %234 = vmatpush1.msra.mxu0 0.0
    %235 = vmatprep.subr.mxu0 0.0
    %236 = vmatpush1.msra.mxu0 0.0
    %237 = vmatprep.subr.mxu0 0.0
    %238 = vmatpush1.msra.mxu0 0.0
    %239 = vmatprep.subr.mxu0 0.0
    %240 = vmatpush1.msra.mxu0 0.0
    %241 = vmatprep.subr.mxu0 0.0
    %242 = vmatpush1.msra.mxu0 0.0
    %243 = vmatprep.subr.mxu0 0.0
    %244 = vmatpush1.msra.mxu0 0.0
    %245 = vmatprep.subr.mxu0 0.0
    %246 = vmatpush1.msra.mxu0 0.0
    %247 = vmatprep.subr.mxu0 0.0
    %248 = vmatpush1.msra.mxu0 0.0
    %249 = vmatprep.subr.mxu0 0.0
    %250 = vmatpush1.msra.mxu0 0.0
    %251 = vmatprep.subr.mxu0 0.0
    %252 = vmatpush1.msra.mxu0 0.0
    %253 = vmatprep.subr.mxu0 0.0
    %254 = vmatpush1.msra.mxu0 0.0
    %255 = vmatprep.subr.mxu0 0.0
    %256 = vmatpush1.msra.mxu0 0.0
    %257 = vmatprep.subr.mxu0 0.0
    %258 = vmatpush1.msra.mxu0 0.0
    %259 = vmatprep.subr.mxu0 0.0
    %260 = vmatpush1.msra.mxu0 0.0
    %261 = vmatprep.subr.mxu0 0.0
    %262 = vmatpush1.msra.mxu0 0.0
    %263 = vmatprep.subr.mxu0 0.0
    %264 = vmatpush1.msra.mxu0 0.0
    %265 = vmatprep.subr.mxu0 0.0
    %266 = vmatpush1.msra.mxu0 0.0
    %267 = vmatprep.subr.mxu0 0.0
    %268 = vmatpush1.msra.mxu0 0.0
    %269 = vmatprep.subr.mxu0 0.0
    %270 = vmatpush1.msra.mxu0 0.0
    %271 = vmatprep.subr.mxu0 0.0
    %272 = vmatpush1.msra.mxu0 0.0
    %273 = vmatprep.subr.mxu0 0.0
    %274 = vmatpush1.msra.mxu0 0.0
    %275 = vmatprep.subr.mxu0 0.0
    %276 = vmatpush1.msra.mxu0 0.0
    %277 = vmatprep.subr.mxu0 0.0
    %278 = vmatpush1.msra.mxu0 0.0
    %279 = vmatprep.subr.mxu0 0.0
    %280 = vmatpush1.msra.mxu0 0.0
    %281 = vmatprep.subr.mxu0 0.0
    %282 = vmatpush1.msra.mxu0 0.0
    %283 = vmatprep.mubr.f32.mxu0 0.0
    %284 = vmatmul.mubr.f32.gmra.mrb[0].mxu0 %v217
    %v285 = vpop.f32.mrb[0].mxu0
    %v286 = vadd.f32 0.0, %v285
    %v287 = vpop.f32.mrb[0].mxu0
    %288 = vdwg.mxu0
    %v289 = vadd.f32 %v207, %v286
    %v290 = vtanh.pop %v289
    %v291 = vmul.f32 %v290, 0.5
    %v292 = vadd.f32 %v291, 0.5
    %v293 = vmul.f32 %v292, 0.0
    %295 = vrot.lane.b32.xlu0 %v290, 64
    %v296 = vpop.permute.xlu0 %295
    %v298 = vmul.f32 %v292, %v296
    %300 = vrot.lane.b32.xlu0 %v298, 32
    %v301 = vpop.permute.xlu0 %300
    %v303 = vadd.f32 %v293, %v301
    %v304 = vtanh.pop %v303
    %306 = vrot.lane.b32.xlu0 %v304, 64
    %v307 = vpop.permute.xlu0 %306
    %v309 = vmul.f32 %v292, %v307
    %311 = vrot.lane.b32.xlu0 %v309, 32
    %v312 = vpop.permute.xlu0 %311
    %vm314 = vcmask 253952
    %315 = vst.msk [vmem:[#allocation2] sm:$0x1] %vm314, %v312
    %v316 = vsel %vm133, %v312, 0
    %318 = vmatprep.subr.mxu0 0.0
    %319 = vmatpush1.msra.mxu0 %v212
    %320 = vmatprep.subr.mxu0 0.0
    %321 = vmatpush1.msra.mxu0 %v213
    %322 = vmatprep.subr.mxu0 0.0
    %323 = vmatpush1.msra.mxu0 %v214
    %324 = vmatprep.subr.mxu0 0.0
    %325 = vmatpush1.msra.mxu0 %v215
    %326 = vmatprep.subr.mxu0 0.0
    %327 = vmatpush1.msra.mxu0 0.0
    %328 = vmatprep.subr.mxu0 0.0
    %329 = vmatpush1.msra.mxu0 0.0
    %330 = vmatprep.subr.mxu0 0.0
    %331 = vmatpush1.msra.mxu0 0.0
    %332 = vmatprep.subr.mxu0 0.0
    %333 = vmatpush1.msra.mxu0 0.0
    %334 = vmatprep.subr.mxu0 0.0
    %335 = vmatpush1.msra.mxu0 0.0
    %336 = vmatprep.subr.mxu0 0.0
    %337 = vmatpush1.msra.mxu0 0.0
    %338 = vmatprep.subr.mxu0 0.0
    %339 = vmatpush1.msra.mxu0 0.0
    %340 = vmatprep.subr.mxu0 0.0
    %341 = vmatpush1.msra.mxu0 0.0
    %342 = vmatprep.subr.mxu0 0.0
    %343 = vmatpush1.msra.mxu0 0.0
    %344 = vmatprep.subr.mxu0 0.0
    %345 = vmatpush1.msra.mxu0 0.0
    %346 = vmatprep.subr.mxu0 0.0
    %347 = vmatpush1.msra.mxu0 0.0
    %348 = vmatprep.subr.mxu0 0.0
    %349 = vmatpush1.msra.mxu0 0.0
    %350 = vmatprep.subr.mxu0 0.0
    %351 = vmatpush1.msra.mxu0 0.0
    %352 = vmatprep.subr.mxu0 0.0
    %353 = vmatpush1.msra.mxu0 0.0
    %354 = vmatprep.subr.mxu0 0.0
    %355 = vmatpush1.msra.mxu0 0.0
    %356 = vmatprep.subr.mxu0 0.0
    %357 = vmatpush1.msra.mxu0 0.0
    %358 = vmatprep.subr.mxu0 0.0
    %359 = vmatpush1.msra.mxu0 0.0
    %360 = vmatprep.subr.mxu0 0.0
    %361 = vmatpush1.msra.mxu0 0.0
    %362 = vmatprep.subr.mxu0 0.0
    %363 = vmatpush1.msra.mxu0 0.0
    %364 = vmatprep.subr.mxu0 0.0
    %365 = vmatpush1.msra.mxu0 0.0
    %366 = vmatprep.subr.mxu0 0.0
    %367 = vmatpush1.msra.mxu0 0.0
    %368 = vmatprep.subr.mxu0 0.0
    %369 = vmatpush1.msra.mxu0 0.0
    %370 = vmatprep.subr.mxu0 0.0
    %371 = vmatpush1.msra.mxu0 0.0
    %372 = vmatprep.subr.mxu0 0.0
    %373 = vmatpush1.msra.mxu0 0.0
    %374 = vmatprep.subr.mxu0 0.0
    %375 = vmatpush1.msra.mxu0 0.0
    %376 = vmatprep.subr.mxu0 0.0
    %377 = vmatpush1.msra.mxu0 0.0
    %378 = vmatprep.subr.mxu0 0.0
    %379 = vmatpush1.msra.mxu0 0.0
    %380 = vmatprep.subr.mxu0 0.0
    %381 = vmatpush1.msra.mxu0 0.0
    %382 = vmatprep.mubr.f32.mxu0 0.0
    %383 = vmatmul.mubr.f32.gmra.mrb[0].mxu0 %v316
    %v384 = vpop.f32.mrb[0].mxu0
    %v385 = vadd.f32 0.0, %v384
    %v386 = vpop.f32.mrb[0].mxu0
    %387 = vdwg.mxu0
    %v389 = vrot.slane %v385, 7
    %v391 = vadd.f32 %v207, %v389
    %v392 = vtanh.pop %v391
    %v393 = vmul.f32 %v392, 0.5
    %v394 = vadd.f32 %v393, 0.5
    %v396 = vrot.slane %v303, 7
    %v398 = vmul.f32 %v394, %v396
    %400 = vrot.lane.b32.xlu0 %v392, 64
    %v401 = vpop.permute.xlu0 %400
    %v403 = vmul.f32 %v394, %v401
    %405 = vrot.lane.b32.xlu0 %v403, 32
    %v406 = vpop.permute.xlu0 %405
    %v408 = vadd.f32 %v398, %v406
    %v409 = vtanh.pop %v408
    %411 = vrot.lane.b32.xlu0 %v409, 64
    %v412 = vpop.permute.xlu0 %411
    %v414 = vmul.f32 %v394, %v412
    %416 = vrot.lane.b32.xlu0 %v414, 32
    %v417 = vpop.permute.xlu0 %416
    %vm419 = vcmask 254977
    %420 = vst.msk [vmem:[#allocation2] sm:$0x2] %vm419, %v417
    %v421 = vrot.slane %v414, 1
    %422 = vrot.lane.b32.xlu0 %v421, 32
    %v423 = vpop.permute.xlu0 %422
    %v424 = vsel %vm133, %v423, 0
    %426 = vmatprep.subr.mxu0 0.0
    %427 = vmatpush1.msra.mxu0 %v212
    %428 = vmatprep.subr.mxu0 0.0
    %429 = vmatpush1.msra.mxu0 %v213
    %430 = vmatprep.subr.mxu0 0.0
    %431 = vmatpush1.msra.mxu0 %v214
    %432 = vmatprep.subr.mxu0 0.0
    %433 = vmatpush1.msra.mxu0 %v215
    %434 = vmatprep.subr.mxu0 0.0
    %435 = vmatpush1.msra.mxu0 0.0
    %436 = vmatprep.subr.mxu0 0.0
    %437 = vmatpush1.msra.mxu0 0.0
    %438 = vmatprep.subr.mxu0 0.0
    %439 = vmatpush1.msra.mxu0 0.0
    %440 = vmatprep.subr.mxu0 0.0
    %441 = vmatpush1.msra.mxu0 0.0
    %442 = vmatprep.subr.mxu0 0.0
    %443 = vmatpush1.msra.mxu0 0.0
    %444 = vmatprep.subr.mxu0 0.0
    %445 = vmatpush1.msra.mxu0 0.0
    %446 = vmatprep.subr.mxu0 0.0
    %447 = vmatpush1.msra.mxu0 0.0
    %448 = vmatprep.subr.mxu0 0.0
    %449 = vmatpush1.msra.mxu0 0.0
    %450 = vmatprep.subr.mxu0 0.0
    %451 = vmatpush1.msra.mxu0 0.0
    %452 = vmatprep.subr.mxu0 0.0
    %453 = vmatpush1.msra.mxu0 0.0
    %454 = vmatprep.subr.mxu0 0.0
    %455 = vmatpush1.msra.mxu0 0.0
    %456 = vmatprep.subr.mxu0 0.0
    %457 = vmatpush1.msra.mxu0 0.0
    %458 = vmatprep.subr.mxu0 0.0
    %459 = vmatpush1.msra.mxu0 0.0
    %460 = vmatprep.subr.mxu0 0.0
    %461 = vmatpush1.msra.mxu0 0.0
    %462 = vmatprep.subr.mxu0 0.0
    %463 = vmatpush1.msra.mxu0 0.0
    %464 = vmatprep.subr.mxu0 0.0
    %465 = vmatpush1.msra.mxu0 0.0
    %466 = vmatprep.subr.mxu0 0.0
    %467 = vmatpush1.msra.mxu0 0.0
    %468 = vmatprep.subr.mxu0 0.0
    %469 = vmatpush1.msra.mxu0 0.0
    %470 = vmatprep.subr.mxu0 0.0
    %471 = vmatpush1.msra.mxu0 0.0
    %472 = vmatprep.subr.mxu0 0.0
    %473 = vmatpush1.msra.mxu0 0.0
    %474 = vmatprep.subr.mxu0 0.0
    %475 = vmatpush1.msra.mxu0 0.0
    %476 = vmatprep.subr.mxu0 0.0
    %477 = vmatpush1.msra.mxu0 0.0
    %478 = vmatprep.subr.mxu0 0.0
    %479 = vmatpush1.msra.mxu0 0.0
    %480 = vmatprep.subr.mxu0 0.0
    %481 = vmatpush1.msra.mxu0 0.0
    %482 = vmatprep.subr.mxu0 0.0
    %483 = vmatpush1.msra.mxu0 0.0
    %484 = vmatprep.subr.mxu0 0.0
    %485 = vmatpush1.msra.mxu0 0.0
    %486 = vmatprep.subr.mxu0 0.0
    %487 = vmatpush1.msra.mxu0 0.0
    %488 = vmatprep.subr.mxu0 0.0
    %489 = vmatpush1.msra.mxu0 0.0
    %490 = vmatprep.mubr.f32.mxu0 0.0
    %491 = vmatmul.mubr.f32.gmra.mrb[0].mxu0 %v424
    %v492 = vpop.f32.mrb[0].mxu0
    %v493 = vadd.f32 0.0, %v492
    %v494 = vpop.f32.mrb[0].mxu0
    %495 = vdwg.mxu0
    %v497 = vrot.slane %v493, 6
    %v499 = vadd.f32 %v207, %v497
    %v500 = vtanh.pop %v499
    %v501 = vmul.f32 %v500, 0.5
    %v502 = vadd.f32 %v501, 0.5
    %v504 = vrot.slane %v408, 7
    %v506 = vmul.f32 %v502, %v504
    %508 = vrot.lane.b32.xlu0 %v500, 64
    %v509 = vpop.permute.xlu0 %508
    %v511 = vmul.f32 %v502, %v509
    %513 = vrot.lane.b32.xlu0 %v511, 32
    %v514 = vpop.permute.xlu0 %513
    %v516 = vadd.f32 %v506, %v514
    %v517 = vtanh.pop %v516
    %519 = vrot.lane.b32.xlu0 %v517, 64
    %v520 = vpop.permute.xlu0 %519
    %v522 = vmul.f32 %v502, %v520
    %524 = vrot.lane.b32.xlu0 %v522, 32
    %v525 = vpop.permute.xlu0 %524
    %vm527 = vcmask 256002
    %528 = vst.msk [vmem:[#allocation2] sm:$0x4] %vm527, %v525
    %v529 = vrot.slane %v522, 2
    %530 = vrot.lane.b32.xlu0 %v529, 32
    %v531 = vpop.permute.xlu0 %530
    %v532 = vsel %vm133, %v531, 0
    %534 = vmatprep.subr.mxu0 0.0
    %535 = vmatpush1.msra.mxu0 %v212
    %536 = vmatprep.subr.mxu0 0.0
    %537 = vmatpush1.msra.mxu0 %v213
    %538 = vmatprep.subr.mxu0 0.0
    %539 = vmatpush1.msra.mxu0 %v214
    %540 = vmatprep.subr.mxu0 0.0
    %541 = vmatpush1.msra.mxu0 %v215
    %542 = vmatprep.subr.mxu0 0.0
    %543 = vmatpush1.msra.mxu0 0.0
    %544 = vmatprep.subr.mxu0 0.0
    %545 = vmatpush1.msra.mxu0 0.0
    %546 = vmatprep.subr.mxu0 0.0
    %547 = vmatpush1.msra.mxu0 0.0
    %548 = vmatprep.subr.mxu0 0.0
    %549 = vmatpush1.msra.mxu0 0.0
    %550 = vmatprep.subr.mxu0 0.0
    %551 = vmatpush1.msra.mxu0 0.0
    %552 = vmatprep.subr.mxu0 0.0
    %553 = vmatpush1.msra.mxu0 0.0
    %554 = vmatprep.subr.mxu0 0.0
    %555 = vmatpush1.msra.mxu0 0.0
    %556 = vmatprep.subr.mxu0 0.0
    %557 = vmatpush1.msra.mxu0 0.0
    %558 = vmatprep.subr.mxu0 0.0
    %559 = vmatpush1.msra.mxu0 0.0
    %560 = vmatprep.subr.mxu0 0.0
    %561 = vmatpush1.msra.mxu0 0.0
    %562 = vmatprep.subr.mxu0 0.0
    %563 = vmatpush1.msra.mxu0 0.0
    %564 = vmatprep.subr.mxu0 0.0
    %565 = vmatpush1.msra.mxu0 0.0
    %566 = vmatprep.subr.mxu0 0.0
    %567 = vmatpush1.msra.mxu0 0.0
    %568 = vmatprep.subr.mxu0 0.0
    %569 = vmatpush1.msra.mxu0 0.0
    %570 = vmatprep.subr.mxu0 0.0
    %571 = vmatpush1.msra.mxu0 0.0
    %572 = vmatprep.subr.mxu0 0.0
    %573 = vmatpush1.msra.mxu0 0.0
    %574 = vmatprep.subr.mxu0 0.0
    %575 = vmatpush1.msra.mxu0 0.0
    %576 = vmatprep.subr.mxu0 0.0
    %577 = vmatpush1.msra.mxu0 0.0
    %578 = vmatprep.subr.mxu0 0.0
    %579 = vmatpush1.msra.mxu0 0.0
    %580 = vmatprep.subr.mxu0 0.0
    %581 = vmatpush1.msra.mxu0 0.0
    %582 = vmatprep.subr.mxu0 0.0
    %583 = vmatpush1.msra.mxu0 0.0
    %584 = vmatprep.subr.mxu0 0.0
    %585 = vmatpush1.msra.mxu0 0.0
    %586 = vmatprep.subr.mxu0 0.0
    %587 = vmatpush1.msra.mxu0 0.0
    %588 = vmatprep.subr.mxu0 0.0
    %589 = vmatpush1.msra.mxu0 0.0
    %590 = vmatprep.subr.mxu0 0.0
    %591 = vmatpush1.msra.mxu0 0.0
    %592 = vmatprep.subr.mxu0 0.0
    %593 = vmatpush1.msra.mxu0 0.0
    %594 = vmatprep.subr.mxu0 0.0
    %595 = vmatpush1.msra.mxu0 0.0
    %596 = vmatprep.subr.mxu0 0.0
    %597 = vmatpush1.msra.mxu0 0.0
    %598 = vmatprep.mubr.f32.mxu0 0.0
    %599 = vmatmul.mubr.f32.gmra.mrb[0].mxu0 %v532
    %v600 = vpop.f32.mrb[0].mxu0
    %v601 = vadd.f32 0.0, %v600
    %v602 = vpop.f32.mrb[0].mxu0
    %603 = vdwg.mxu0
    %v605 = vrot.slane %v601, 5
    %v607 = vadd.f32 %v207, %v605
    %v608 = vtanh.pop %v607
    %v609 = vmul.f32 %v608, 0.5
    %v610 = vadd.f32 %v609, 0.5
    %v612 = vrot.slane %v516, 7
    %v614 = vmul.f32 %v610, %v612
    %616 = vrot.lane.b32.xlu0 %v608, 64
    %v617 = vpop.permute.xlu0 %616
    %v619 = vmul.f32 %v610, %v617
    %621 = vrot.lane.b32.xlu0 %v619, 32
    %v622 = vpop.permute.xlu0 %621
    %v624 = vadd.f32 %v614, %v622
    %v625 = vtanh.pop %v624
    %627 = vrot.lane.b32.xlu0 %v625, 64
    %v628 = vpop.permute.xlu0 %627
    %v630 = vmul.f32 %v610, %v628
    %632 = vrot.lane.b32.xlu0 %v630, 32
    %v633 = vpop.permute.xlu0 %632
    %vm635 = vcmask 257027
    %636 = vst.msk [vmem:[#allocation2] sm:$0x8] %vm635, %v633
    %v637 = vrot.slane %v630, 3
    %638 = vrot.lane.b32.xlu0 %v637, 32
    %v639 = vpop.permute.xlu0 %638
    %v640 = vsel %vm133, %v639, 0
    %642 = vmatprep.subr.mxu0 0.0
    %643 = vmatpush1.msra.mxu0 %v212
    %644 = vmatprep.subr.mxu0 0.0
    %645 = vmatpush1.msra.mxu0 %v213
    %646 = vmatprep.subr.mxu0 0.0
    %647 = vmatpush1.msra.mxu0 %v214
    %648 = vmatprep.subr.mxu0 0.0
    %649 = vmatpush1.msra.mxu0 %v215
    %650 = vmatprep.subr.mxu0 0.0
    %651 = vmatpush1.msra.mxu0 0.0
    %652 = vmatprep.subr.mxu0 0.0
    %653 = vmatpush1.msra.mxu0 0.0
    %654 = vmatprep.subr.mxu0 0.0
    %655 = vmatpush1.msra.mxu0 0.0
    %656 = vmatprep.subr.mxu0 0.0
    %657 = vmatpush1.msra.mxu0 0.0
    %658 = vmatprep.subr.mxu0 0.0
    %659 = vmatpush1.msra.mxu0 0.0
    %660 = vmatprep.subr.mxu0 0.0
    %661 = vmatpush1.msra.mxu0 0.0
    %662 = vmatprep.subr.mxu0 0.0
    %663 = vmatpush1.msra.mxu0 0.0
    %664 = vmatprep.subr.mxu0 0.0
    %665 = vmatpush1.msra.mxu0 0.0
    %666 = vmatprep.subr.mxu0 0.0
    %667 = vmatpush1.msra.mxu0 0.0
    %668 = vmatprep.subr.mxu0 0.0
    %669 = vmatpush1.msra.mxu0 0.0
    %670 = vmatprep.subr.mxu0 0.0
    %671 = vmatpush1.msra.mxu0 0.0
    %672 = vmatprep.subr.mxu0 0.0
    %673 = vmatpush1.msra.mxu0 0.0
    %674 = vmatprep.subr.mxu0 0.0
    %675 = vmatpush1.msra.mxu0 0.0
    %676 = vmatprep.subr.mxu0 0.0
    %677 = vmatpush1.msra.mxu0 0.0
    %678 = vmatprep.subr.mxu0 0.0
    %679 = vmatpush1.msra.mxu0 0.0
    %680 = vmatprep.subr.mxu0 0.0
    %681 = vmatpush1.msra.mxu0 0.0
    %682 = vmatprep.subr.mxu0 0.0
    %683 = vmatpush1.msra.mxu0 0.0
    %684 = vmatprep.subr.mxu0 0.0
    %685 = vmatpush1.msra.mxu0 0.0
    %686 = vmatprep.subr.mxu0 0.0
    %687 = vmatpush1.msra.mxu0 0.0
    %688 = vmatprep.subr.mxu0 0.0
    %689 = vmatpush1.msra.mxu0 0.0
    %690 = vmatprep.subr.mxu0 0.0
    %691 = vmatpush1.msra.mxu0 0.0
    %692 = vmatprep.subr.mxu0 0.0
    %693 = vmatpush1.msra.mxu0 0.0
    %694 = vmatprep.subr.mxu0 0.0
    %695 = vmatpush1.msra.mxu0 0.0
    %696 = vmatprep.subr.mxu0 0.0
    %697 = vmatpush1.msra.mxu0 0.0
    %698 = vmatprep.subr.mxu0 0.0
    %699 = vmatpush1.msra.mxu0 0.0
    %700 = vmatprep.subr.mxu0 0.0
    %701 = vmatpush1.msra.mxu0 0.0
    %702 = vmatprep.subr.mxu0 0.0
    %703 = vmatpush1.msra.mxu0 0.0
    %704 = vmatprep.subr.mxu0 0.0
    %705 = vmatpush1.msra.mxu0 0.0
    %706 = vmatprep.mubr.f32.mxu0 0.0
    %707 = vmatmul.mubr.f32.gmra.mrb[0].mxu0 %v640
    %v708 = vpop.f32.mrb[0].mxu0
    %v709 = vadd.f32 0.0, %v708
    %v710 = vpop.f32.mrb[0].mxu0
    %711 = vdwg.mxu0
    %v713 = vrot.slane %v709, 4
    %v715 = vadd.f32 %v207, %v713
    %v716 = vtanh.pop %v715
    %v717 = vmul.f32 %v716, 0.5
    %v718 = vadd.f32 %v717, 0.5
    %v720 = vrot.slane %v624, 7
    %v722 = vmul.f32 %v718, %v720
    %724 = vrot.lane.b32.xlu0 %v716, 64
    %v725 = vpop.permute.xlu0 %724
    %v727 = vmul.f32 %v718, %v725
    %729 = vrot.lane.b32.xlu0 %v727, 32
    %v730 = vpop.permute.xlu0 %729
    %v732 = vadd.f32 %v722, %v730
    %v733 = vtanh.pop %v732
    %735 = vrot.lane.b32.xlu0 %v733, 64
    %v736 = vpop.permute.xlu0 %735
    %v738 = vmul.f32 %v718, %v736
    %740 = vrot.lane.b32.xlu0 %v738, 32
    %v741 = vpop.permute.xlu0 %740
    %vm743 = vcmask 258052
    %744 = vst.msk [vmem:[#allocation2] sm:$0x10] %vm743, %v741
    %v745 = vrot.slane %v738, 4
    %746 = vrot.lane.b32.xlu0 %v745, 32
    %v747 = vpop.permute.xlu0 %746
    %v748 = vsel %vm133, %v747, 0
    %750 = vmatprep.subr.mxu0 0.0
    %751 = vmatpush1.msra.mxu0 %v212
    %752 = vmatprep.subr.mxu0 0.0
    %753 = vmatpush1.msra.mxu0 %v213
    %754 = vmatprep.subr.mxu0 0.0
    %755 = vmatpush1.msra.mxu0 %v214
    %756 = vmatprep.subr.mxu0 0.0
    %757 = vmatpush1.msra.mxu0 %v215
    %758 = vmatprep.subr.mxu0 0.0
    %759 = vmatpush1.msra.mxu0 0.0
    %760 = vmatprep.subr.mxu0 0.0
    %761 = vmatpush1.msra.mxu0 0.0
    %762 = vmatprep.subr.mxu0 0.0
    %763 = vmatpush1.msra.mxu0 0.0
    %764 = vmatprep.subr.mxu0 0.0
    %765 = vmatpush1.msra.mxu0 0.0
    %766 = vmatprep.subr.mxu0 0.0
    %767 = vmatpush1.msra.mxu0 0.0
    %768 = vmatprep.subr.mxu0 0.0
    %769 = vmatpush1.msra.mxu0 0.0
    %770 = vmatprep.subr.mxu0 0.0
    %771 = vmatpush1.msra.mxu0 0.0
    %772 = vmatprep.subr.mxu0 0.0
    %773 = vmatpush1.msra.mxu0 0.0
    %774 = vmatprep.subr.mxu0 0.0
    %775 = vmatpush1.msra.mxu0 0.0
    %776 = vmatprep.subr.mxu0 0.0
    %777 = vmatpush1.msra.mxu0 0.0
    %778 = vmatprep.subr.mxu0 0.0
    %779 = vmatpush1.msra.mxu0 0.0
    %780 = vmatprep.subr.mxu0 0.0
    %781 = vmatpush1.msra.mxu0 0.0
    %782 = vmatprep.subr.mxu0 0.0
    %783 = vmatpush1.msra.mxu0 0.0
    %784 = vmatprep.subr.mxu0 0.0
    %785 = vmatpush1.msra.mxu0 0.0
    %786 = vmatprep.subr.mxu0 0.0
    %787 = vmatpush1.msra.mxu0 0.0
    %788 = vmatprep.subr.mxu0 0.0
    %789 = vmatpush1.msra.mxu0 0.0
    %790 = vmatprep.subr.mxu0 0.0
    %791 = vmatpush1.msra.mxu0 0.0
    %792 = vmatprep.subr.mxu0 0.0
    %793 = vmatpush1.msra.mxu0 0.0
    %794 = vmatprep.subr.mxu0 0.0
    %795 = vmatpush1.msra.mxu0 0.0
    %796 = vmatprep.subr.mxu0 0.0
    %797 = vmatpush1.msra.mxu0 0.0
    %798 = vmatprep.subr.mxu0 0.0
    %799 = vmatpush1.msra.mxu0 0.0
    %800 = vmatprep.subr.mxu0 0.0
    %801 = vmatpush1.msra.mxu0 0.0
    %802 = vmatprep.subr.mxu0 0.0
    %803 = vmatpush1.msra.mxu0 0.0
    %804 = vmatprep.subr.mxu0 0.0
    %805 = vmatpush1.msra.mxu0 0.0
    %806 = vmatprep.subr.mxu0 0.0
    %807 = vmatpush1.msra.mxu0 0.0
    %808 = vmatprep.subr.mxu0 0.0
    %809 = vmatpush1.msra.mxu0 0.0
    %810 = vmatprep.subr.mxu0 0.0
    %811 = vmatpush1.msra.mxu0 0.0
    %812 = vmatprep.subr.mxu0 0.0
    %813 = vmatpush1.msra.mxu0 0.0
    %814 = vmatprep.mubr.f32.mxu0 0.0
    %815 = vmatmul.mubr.f32.gmra.mrb[0].mxu0 %v748
    %v816 = vpop.f32.mrb[0].mxu0
    %v817 = vadd.f32 0.0, %v816
    %v818 = vpop.f32.mrb[0].mxu0
    %819 = vdwg.mxu0
    %v821 = vrot.slane %v817, 3
    %v823 = vadd.f32 %v207, %v821
    %v824 = vtanh.pop %v823
    %v825 = vmul.f32 %v824, 0.5
    %v826 = vadd.f32 %v825, 0.5
    %v828 = vrot.slane %v732, 7
    %v830 = vmul.f32 %v826, %v828
    %832 = vrot.lane.b32.xlu0 %v824, 64
    %v833 = vpop.permute.xlu0 %832
    %v835 = vmul.f32 %v826, %v833
    %837 = vrot.lane.b32.xlu0 %v835, 32
    %v838 = vpop.permute.xlu0 %837
    %v840 = vadd.f32 %v830, %v838
    %v841 = vtanh.pop %v840
    %843 = vrot.lane.b32.xlu0 %v841, 64
    %v844 = vpop.permute.xlu0 %843
    %v846 = vmul.f32 %v826, %v844
    %848 = vrot.lane.b32.xlu0 %v846, 32
    %v849 = vpop.permute.xlu0 %848
    %vm851 = vcmask 259077
    %852 = vst.msk [vmem:[#allocation2] sm:$0x20] %vm851, %v849
    %v853 = vrot.slane %v846, 5
    %854 = vrot.lane.b32.xlu0 %v853, 32
    %v855 = vpop.permute.xlu0 %854
    %v856 = vsel %vm133, %v855, 0
    %858 = vmatprep.subr.mxu0 0.0
    %859 = vmatpush1.msra.mxu0 %v212
    %860 = vmatprep.subr.mxu0 0.0
    %861 = vmatpush1.msra.mxu0 %v213
    %862 = vmatprep.subr.mxu0 0.0
    %863 = vmatpush1.msra.mxu0 %v214
    %864 = vmatprep.subr.mxu0 0.0
    %865 = vmatpush1.msra.mxu0 %v215
    %866 = vmatprep.subr.mxu0 0.0
    %867 = vmatpush1.msra.mxu0 0.0
    %868 = vmatprep.subr.mxu0 0.0
    %869 = vmatpush1.msra.mxu0 0.0
    %870 = vmatprep.subr.mxu0 0.0
    %871 = vmatpush1.msra.mxu0 0.0
    %872 = vmatprep.subr.mxu0 0.0
    %873 = vmatpush1.msra.mxu0 0.0
    %874 = vmatprep.subr.mxu0 0.0
    %875 = vmatpush1.msra.mxu0 0.0
    %876 = vmatprep.subr.mxu0 0.0
    %877 = vmatpush1.msra.mxu0 0.0
    %878 = vmatprep.subr.mxu0 0.0
    %879 = vmatpush1.msra.mxu0 0.0
    %880 = vmatprep.subr.mxu0 0.0
    %881 = vmatpush1.msra.mxu0 0.0
    %882 = vmatprep.subr.mxu0 0.0
    %883 = vmatpush1.msra.mxu0 0.0
    %884 = vmatprep.subr.mxu0 0.0
    %885 = vmatpush1.msra.mxu0 0.0
    %886 = vmatprep.subr.mxu0 0.0
    %887 = vmatpush1.msra.mxu0 0.0
    %888 = vmatprep.subr.mxu0 0.0
    %889 = vmatpush1.msra.mxu0 0.0
    %890 = vmatprep.subr.mxu0 0.0
    %891 = vmatpush1.msra.mxu0 0.0
    %892 = vmatprep.subr.mxu0 0.0
    %893 = vmatpush1.msra.mxu0 0.0
    %894 = vmatprep.subr.mxu0 0.0
    %895 = vmatpush1.msra.mxu0 0.0
    %896 = vmatprep.subr.mxu0 0.0
    %897 = vmatpush1.msra.mxu0 0.0
    %898 = vmatprep.subr.mxu0 0.0
    %899 = vmatpush1.msra.mxu0 0.0
    %900 = vmatprep.subr.mxu0 0.0
    %901 = vmatpush1.msra.mxu0 0.0
    %902 = vmatprep.subr.mxu0 0.0
    %903 = vmatpush1.msra.mxu0 0.0
    %904 = vmatprep.subr.mxu0 0.0
    %905 = vmatpush1.msra.mxu0 0.0
    %906 = vmatprep.subr.mxu0 0.0
    %907 = vmatpush1.msra.mxu0 0.0
    %908 = vmatprep.subr.mxu0 0.0
    %909 = vmatpush1.msra.mxu0 0.0
    %910 = vmatprep.subr.mxu0 0.0
    %911 = vmatpush1.msra.mxu0 0.0
    %912 = vmatprep.subr.mxu0 0.0
    %913 = vmatpush1.msra.mxu0 0.0
    %914 = vmatprep.subr.mxu0 0.0
    %915 = vmatpush1.msra.mxu0 0.0
    %916 = vmatprep.subr.mxu0 0.0
    %917 = vmatpush1.msra.mxu0 0.0
    %918 = vmatprep.subr.mxu0 0.0
    %919 = vmatpush1.msra.mxu0 0.0
    %920 = vmatprep.subr.mxu0 0.0
    %921 = vmatpush1.msra.mxu0 0.0
    %922 = vmatprep.mubr.f32.mxu0 0.0
    %923 = vmatmul.mubr.f32.gmra.mrb[0].mxu0 %v856
    %v924 = vpop.f32.mrb[0].mxu0
    %v925 = vadd.f32 0.0, %v924
    %v926 = vpop.f32.mrb[0].mxu0
    %927 = vdwg.mxu0
    %v929 = vrot.slane %v925, 2
    %v931 = vadd.f32 %v207, %v929
    %v932 = vtanh.pop %v931
    %v933 = vmul.f32 %v932, 0.5
    %v934 = vadd.f32 %v933, 0.5
    %v936 = vrot.slane %v840, 7
    %v938 = vmul.f32 %v934, %v936
    %940 = vrot.lane.b32.xlu0 %v932, 64
    %v941 = vpop.permute.xlu0 %940
    %v943 = vmul.f32 %v934, %v941
    %945 = vrot.lane.b32.xlu0 %v943, 32
    %v946 = vpop.permute.xlu0 %945
    %v948 = vadd.f32 %v938, %v946
    %v949 = vtanh.pop %v948
    %951 = vrot.lane.b32.xlu0 %v949, 64
    %v952 = vpop.permute.xlu0 %951
    %v954 = vmul.f32 %v934, %v952
    %956 = vrot.lane.b32.xlu0 %v954, 32
    %v957 = vpop.permute.xlu0 %956
    %vm959 = vcmask 260102
    %960 = vst.msk [vmem:[#allocation2] sm:$0x40] %vm959, %v957
    %v961 = vrot.slane %v954, 6
    %962 = vrot.lane.b32.xlu0 %v961, 32
    %v963 = vpop.permute.xlu0 %962
    %v964 = vsel %vm133, %v963, 0
    %966 = vmatprep.subr.mxu0 0.0
    %967 = vmatpush1.msra.mxu0 %v212
    %968 = vmatprep.subr.mxu0 0.0
    %969 = vmatpush1.msra.mxu0 %v213
    %970 = vmatprep.subr.mxu0 0.0
    %971 = vmatpush1.msra.mxu0 %v214
    %972 = vmatprep.subr.mxu0 0.0
    %973 = vmatpush1.msra.mxu0 %v215
    %974 = vmatprep.subr.mxu0 0.0
    %975 = vmatpush1.msra.mxu0 0.0
    %976 = vmatprep.subr.mxu0 0.0
    %977 = vmatpush1.msra.mxu0 0.0
    %978 = vmatprep.subr.mxu0 0.0
    %979 = vmatpush1.msra.mxu0 0.0
    %980 = vmatprep.subr.mxu0 0.0
    %981 = vmatpush1.msra.mxu0 0.0
    %982 = vmatprep.subr.mxu0 0.0
    %983 = vmatpush1.msra.mxu0 0.0
    %984 = vmatprep.subr.mxu0 0.0
    %985 = vmatpush1.msra.mxu0 0.0
    %986 = vmatprep.subr.mxu0 0.0
    %987 = vmatpush1.msra.mxu0 0.0
    %988 = vmatprep.subr.mxu0 0.0
    %989 = vmatpush1.msra.mxu0 0.0
    %990 = vmatprep.subr.mxu0 0.0
    %991 = vmatpush1.msra.mxu0 0.0
    %992 = vmatprep.subr.mxu0 0.0
    %993 = vmatpush1.msra.mxu0 0.0
    %994 = vmatprep.subr.mxu0 0.0
    %995 = vmatpush1.msra.mxu0 0.0
    %996 = vmatprep.subr.mxu0 0.0
    %997 = vmatpush1.msra.mxu0 0.0
    %998 = vmatprep.subr.mxu0 0.0
    %999 = vmatpush1.msra.mxu0 0.0
    %1000 = vmatprep.subr.mxu0 0.0
    %1001 = vmatpush1.msra.mxu0 0.0
    %1002 = vmatprep.subr.mxu0 0.0
    %1003 = vmatpush1.msra.mxu0 0.0
    %1004 = vmatprep.subr.mxu0 0.0
    %1005 = vmatpush1.msra.mxu0 0.0
    %1006 = vmatprep.subr.mxu0 0.0
    %1007 = vmatpush1.msra.mxu0 0.0
    %1008 = vmatprep.subr.mxu0 0.0
    %1009 = vmatpush1.msra.mxu0 0.0
    %1010 = vmatprep.subr.mxu0 0.0
    %1011 = vmatpush1.msra.mxu0 0.0
    %1012 = vmatprep.subr.mxu0 0.0
    %1013 = vmatpush1.msra.mxu0 0.0
    %1014 = vmatprep.subr.mxu0 0.0
    %1015 = vmatpush1.msra.mxu0 0.0
    %1016 = vmatprep.subr.mxu0 0.0
    %1017 = vmatpush1.msra.mxu0 0.0
    %1018 = vmatprep.subr.mxu0 0.0
    %1019 = vmatpush1.msra.mxu0 0.0
    %1020 = vmatprep.subr.mxu0 0.0
    %1021 = vmatpush1.msra.mxu0 0.0
    %1022 = vmatprep.subr.mxu0 0.0
    %1023 = vmatpush1.msra.mxu0 0.0
    %1024 = vmatprep.subr.mxu0 0.0
    %1025 = vmatpush1.msra.mxu0 0.0
    %1026 = vmatprep.subr.mxu0 0.0
    %1027 = vmatpush1.msra.mxu0 0.0
    %1028 = vmatprep.subr.mxu0 0.0
    %1029 = vmatpush1.msra.mxu0 0.0
    %1030 = vmatprep.mubr.f32.mxu0 0.0
    %1031 = vmatmul.mubr.f32.gmra.mrb[0].mxu0 %v964
    %v1032 = vpop.f32.mrb[0].mxu0
    %v1033 = vadd.f32 0.0, %v1032
    %v1034 = vpop.f32.mrb[0].mxu0
    %1035 = vdwg.mxu0
    %v1037 = vrot.slane %v1033, 1
    %v1039 = vadd.f32 %v207, %v1037
    %v1040 = vtanh.pop %v1039
    %v1041 = vmul.f32 %v1040, 0.5
    %v1042 = vadd.f32 %v1041, 0.5
    %v1044 = vrot.slane %v948, 7
    %v1046 = vmul.f32 %v1042, %v1044
    %1048 = vrot.lane.b32.xlu0 %v1040, 64
    %v1049 = vpop.permute.xlu0 %1048
    %v1051 = vmul.f32 %v1042, %v1049
    %1053 = vrot.lane.b32.xlu0 %v1051, 32
    %v1054 = vpop.permute.xlu0 %1053
    %v1056 = vadd.f32 %v1046, %v1054
    %v1057 = vtanh.pop %v1056
    %1059 = vrot.lane.b32.xlu0 %v1057, 64
    %v1060 = vpop.permute.xlu0 %1059
    %v1062 = vmul.f32 %v1042, %v1060
    %1064 = vrot.lane.b32.xlu0 %v1062, 32
    %v1065 = vpop.permute.xlu0 %1064
    %vm1067 = vcmask 261127
    %1068 = vst.msk [vmem:[#allocation2] sm:$0x80] %vm1067, %v1065
    %v1069 = vld [vmem:[#allocation2] sm:$0xff]
    %v1070 = vld [vmem:[%s5] sm:$0xff]
    %v1071 = vld [vmem:[%s5 + $0x8] sm:$0xff]
    %v1072 = vld [vmem:[%s5 + $0x10] sm:$0xff]
    %v1073 = vld [vmem:[%s5 + $0x18] sm:$0xff]
    %v1074 = vld [vmem:[%s6] sm:$0x1]
    %v1076 = vlaneseq
    %v1077 = vshrl.u32 %v1076, 7
    %v1078 = vsub.s32 0, %v1077
    %v1079 = vrot.slane %v1074, %v1078
    %v1082 = vsel %vm133, %v1069, 0
    %1084 = vmatprep.subr.mxu0 0.0
    %1085 = vmatpush1.msra.mxu0 %v1070
    %1086 = vmatprep.subr.mxu0 0.0
    %1087 = vmatpush1.msra.mxu0 %v1071
    %1088 = vmatprep.subr.mxu0 0.0
    %1089 = vmatpush1.msra.mxu0 %v1072
    %1090 = vmatprep.subr.mxu0 0.0
    %1091 = vmatpush1.msra.mxu0 %v1073
    %1092 = vmatprep.subr.mxu0 0.0
    %1093 = vmatpush1.msra.mxu0 0.0
    %1094 = vmatprep.subr.mxu0 0.0
    %1095 = vmatpush1.msra.mxu0 0.0
    %1096 = vmatprep.subr.mxu0 0.0
    %1097 = vmatpush1.msra.mxu0 0.0
    %1098 = vmatprep.subr.mxu0 0.0
    %1099 = vmatpush1.msra.mxu0 0.0
    %1100 = vmatprep.subr.mxu0 0.0
    %1101 = vmatpush1.msra.mxu0 0.0
    %1102 = vmatprep.subr.mxu0 0.0
    %1103 = vmatpush1.msra.mxu0 0.0
    %1104 = vmatprep.subr.mxu0 0.0
    %1105 = vmatpush1.msra.mxu0 0.0
    %1106 = vmatprep.subr.mxu0 0.0
    %1107 = vmatpush1.msra.mxu0 0.0
    %1108 = vmatprep.subr.mxu0 0.0
    %1109 = vmatpush1.msra.mxu0 0.0
    %1110 = vmatprep.subr.mxu0 0.0
    %1111 = vmatpush1.msra.mxu0 0.0
    %1112 = vmatprep.subr.mxu0 0.0
    %1113 = vmatpush1.msra.mxu0 0.0
    %1114 = vmatprep.subr.mxu0 0.0
    %1115 = vmatpush1.msra.mxu0 0.0
    %1116 = vmatprep.subr.mxu0 0.0
    %1117 = vmatpush1.msra.mxu0 0.0
    %1118 = vmatprep.subr.mxu0 0.0
    %1119 = vmatpush1.msra.mxu0 0.0
    %1120 = vmatprep.subr.mxu0 0.0
    %1121 = vmatpush1.msra.mxu0 0.0
    %1122 = vmatprep.subr.mxu0 0.0
    %1123 = vmatpush1.msra.mxu0 0.0
    %1124 = vmatprep.subr.mxu0 0.0
    %1125 = vmatpush1.msra.mxu0 0.0
    %1126 = vmatprep.subr.mxu0 0.0
    %1127 = vmatpush1.msra.mxu0 0.0
    %1128 = vmatprep.subr.mxu0 0.0
    %1129 = vmatpush1.msra.mxu0 0.0
    %1130 = vmatprep.subr.mxu0 0.0
    %1131 = vmatpush1.msra.mxu0 0.0
    %1132 = vmatprep.subr.mxu0 0.0
    %1133 = vmatpush1.msra.mxu0 0.0
    %1134 = vmatprep.subr.mxu0 0.0
    %1135 = vmatpush1.msra.mxu0 0.0
    %1136 = vmatprep.subr.mxu0 0.0
    %1137 = vmatpush1.msra.mxu0 0.0
    %1138 = vmatprep.subr.mxu0 0.0
    %1139 = vmatpush1.msra.mxu0 0.0
    %1140 = vmatprep.subr.mxu0 0.0
    %1141 = vmatpush1.msra.mxu0 0.0
    %1142 = vmatprep.subr.mxu0 0.0
    %1143 = vmatpush1.msra.mxu0 0.0
    %1144 = vmatprep.subr.mxu0 0.0
    %1145 = vmatpush1.msra.mxu0 0.0
    %1146 = vmatprep.subr.mxu0 0.0
    %1147 = vmatpush1.msra.mxu0 0.0
    %1148 = vmatprep.mubr.f32.mxu0 0.0
    %1149 = vmatmul.mubr.f32.gmra.mrb[0].mxu0 %v1082
    %v1150 = vpop.f32.mrb[0].mxu0
    %v1151 = vadd.f32 %v1079, %v1150
    %v1152 = vpop.f32.mrb[0].mxu0
    %1153 = vdwg.mxu0
    %1154 = vmax.xlane.f32.xlu0 %v1151
    %v1155 = vpop.xlane.xlu0 %1154
    %v1156 = vsub.f32 %v1151, %v1155
    %v1157 = vmul.f32 %v1156, 1.442695
    %v1158 = vpow.pop %v1157
    %1159 = vadd.xlane.f32.xlu0 %v1158
    %v1160 = vpop.xlane.xlu0 %1159
    %v1161 = vlog2.pop %v1160
    %v1162 = vmul.f32 %v1161, 0.6931472
    %v1163 = vsub.f32 %v1156, %v1162
    %1164 = vst [vmem:[#allocation3] sm:$0xff] %v1163
    // Predicated region
    $region30: #{lstm_lm_forward.1} parent=1 // pred_check
      _
    $region31: #{lstm_lm_forward.1} parent=1 // pred_check_branch
      %1166 = sbr.rel (0) target = $region33
    $region32: #{lstm_lm_forward.1} parent=1 // pred_region
      %s1168 = ssub.s32 128, 128
      %1169 = vsyncadd [#allocation4], %s1168
      %s1171 = sshll.u32 [#allocation3], 4
      %s1172 = int_to_ptr.vmem [resolvable:$true] %s1171
      %1174 = dma.vmem_to_hbm [thread:$0]  %s1172, 128, %s7, [#allocation4]
    $region33: #{lstm_lm_forward.1} parent=1 // pred_fallthru
      _
    // Predicated region
    $region34: #{lstm_lm_forward.1} parent=1 // pred_check
      _
    $region35: #{lstm_lm_forward.1} parent=1 // pred_check_branch
      %1176 = sbr.rel (0) target = $region37
    $region36: #{lstm_lm_forward.1} parent=1 // pred_region
      %1177 = dma.done [#allocation4], 128
    $region37: #{lstm_lm_forward.1} parent=1 // pred_fallthru
      _
    %1178 = vsyncpa [#allocation4], 1

</llo_original>
